<compile_context>
chip_gen: v5e
topology: v5e:2x2
jax: 0.10.0
libtpu: 0.0.40
codegen_flags: <defaults>
</compile_context>

<pallas_src>
import math

import jax
import jax.numpy as jnp
from jax.experimental import pallas as pl
from jax.experimental.pallas import tpu as pltpu


def _rope_kernel(x_ref, tbl_ref, y_ref):
    """x_ref / y_ref: (1, ts, *tail);  tbl_ref: (3, ts, *tail_t) with
    tail_t broadcastable against tail (same rank, table rows = 1).

    tbl[0] = cos (repeated per pair), tbl[1] = -sin on even lanes / 0 on odd,
    tbl[2] = +sin on odd lanes / 0 on even.  The adjacent-pair swap is done
    with two XLU lane rotations; the zeroed table entries kill both the wrong
    parity term and the wrap-around lanes (0 and L-1), so no select is needed:
        y[2k]   = x[2k]   * cos_k - x[2k+1] * sin_k
        y[2k+1] = x[2k+1] * cos_k + x[2k]   * sin_k
    """
    x = x_ref[...].astype(jnp.float32)
    c = tbl_ref[0][None]      # (1, ts, *tail_t) -> broadcasts over batch/rows
    s_e = tbl_ref[1][None]
    s_o = tbl_ref[2][None]

    last = x.ndim - 1
    L = x.shape[last]
    x_up = pltpu.roll(x, L - 1, axis=last)   # out[j] = x[(j + 1) % L]
    x_dn = pltpu.roll(x, 1, axis=last)       # out[j] = x[(j - 1) % L]

    y_ref[...] = (x * c + x_up * s_e + x_dn * s_o).astype(y_ref.dtype)


def _vmem_budget():
    """(double-buffered working-set budget, vmem_limit_bytes), per generation."""
    cap = None
    try:
        info = pltpu.get_tpu_info()
        cap = getattr(info, "vmem_capacity_bytes", None)
    except Exception:
        cap = None
    if cap is None:
        cap = 64 * 1024 * 1024            # conservative (v7x-safe) fallback
    if cap >= 96 * 1024 * 1024:           # v5e / v6e: 128 MiB physical VMEM
        return 28 * 1024 * 1024, 64 * 1024 * 1024
    return 20 * 1024 * 1024, 48 * 1024 * 1024   # v7x-class: 64 MiB per TC


def _pick_seq_tile(s, cap, min_tiles):
    """Largest divisor of s that is <= cap and leaves >= min_tiles tiles."""
    cap = max(1, min(cap, s))
    best = 1
    i = 1
    while i * i <= s:
        if s % i == 0:
            for d_ in (i, s // i):
                if d_ <= cap and (s // d_) >= min_tiles and d_ > best:
                    best = d_
        i += 1
    return best


def rotary_embedding(x, start_pos=0, theta=10000.0):
    """Equivalent of RotaryEmbedding.forward(x, start_pos), x: (b, s, n, d)."""
    b, s, n, d = x.shape
    assert d % 2 == 0, "head dim must be even for rotary embedding"

    # ---- rotary tables (tiny, parameter-free); positions start_pos..+s ------
    div_term = jnp.exp(
        jnp.arange(0, d, 2, dtype=jnp.float32) * -(math.log(theta) / d)
    )                                                        # (d/2,)
    pos = start_pos + jnp.arange(s, dtype=jnp.float32)       # traced-safe
    freqs = pos[:, None] * div_term[None, :]                 # (s, d/2)
    cos_d = jnp.repeat(jnp.cos(freqs), 2, axis=-1)           # (s, d): c0,c0,c1,c1,...
    sin_d = jnp.repeat(jnp.sin(freqs), 2, axis=-1)           # (s, d): s0,s0,s1,s1,...
    even = (jnp.arange(d) % 2) == 0
    sin_e = jnp.where(even[None, :], -sin_d, 0.0)            # -sin on even lanes
    sin_o = jnp.where(even[None, :], 0.0, sin_d)             # +sin on odd lanes
    tbl = jnp.stack([cos_d, sin_e, sin_o], axis=0)           # (3, s, d)

    # ---- lane-dense views -----------------------------------------------------
    if (n * d) % 128 == 0 and 128 % d == 0:
        # (n, d) collapses to (R, 128); table pattern repeats every d lanes.
        R = (n * d) // 128
        x_view = x.reshape(b, s, R, 128)
        tbl_view = jnp.tile(tbl, (1, 1, 128 // d))[:, :, None, :]     # (3, s, 1, 128)
    elif d % 128 == 0:
        # Big head dim: split d into 128-lane chunks, keep n as a broadcast dim.
        x_view = x.reshape(b, s, n, d // 128, 128)
        tbl_view = tbl.reshape(3, s, d // 128, 128)[:, :, None, :, :]  # (3, s, 1, d//128, 128)
    else:
        # TODO(synk): odd head dims (128 % d != 0 and d % 128 != 0, or n*d not a
        # multiple of 128) fall back to a d-wide lane layout; stores are
        # lane-masked when d < 128.
        x_view = x
        tbl_view = tbl[:, :, None, :]                                  # (3, s, 1, d)

    tail = x_view.shape[2:]
    tail_t = tbl_view.shape[2:]
    rank = x_view.ndim

    # ---- sequence tiling -------------------------------------------------------
    budget, vmem_limit = _vmem_budget()
    itemsize = jnp.dtype(x.dtype).itemsize
    row_bytes = math.prod(tail) * itemsize * 2 + 3 * math.prod(tail_t) * 4
    ts_cap = max(1, budget // (2 * row_bytes))                 # double-buffered

    min_tiles = 2 if (b == 1 and s >= 16) else 1               # feed both v7x TCs
    ts = _pick_seq_tile(s, ts_cap, min_tiles)
    if min_tiles > 1 and ts < 8:
        ts = _pick_seq_tile(s, ts_cap, 1)                      # don't over-shrink
    if ts < min(8, s) and ts_cap >= 8 and s > 8:
        # s has no usable divisors (e.g. prime): accept one ragged tail tile.
        ts = (min(ts_cap, s) // 8) * 8
    num_s_tiles = pl.cdiv(s, ts)

    zeros_tail = (0,) * (rank - 2)
    x_spec = pl.BlockSpec((1, ts) + tail, lambda si, bi: (bi, si) + zeros_tail)
    t_spec = pl.BlockSpec((3, ts) + tail_t, lambda si, bi: (0, si) + zeros_tail)

    y = pl.pallas_call(
        _rope_kernel,
        out_shape=jax.ShapeDtypeStruct(x_view.shape, x.dtype),
        grid=(num_s_tiles, b),                 # batch innermost -> table DMA reuse
        in_specs=[x_spec, t_spec],
        out_specs=x_spec,
        compiler_params=pltpu.CompilerParams(
            dimension_semantics=("parallel", "parallel"),
            vmem_limit_bytes=vmem_limit,
        ),
    )(x_view, tbl_view)

    return y.reshape(b, s, n, d)


def _rotary_embedding_ref(x, start_pos=0, theta=10000.0):
    """Pure-JAX reference mirroring the PyTorch complex-multiply formulation."""
    b, s, n, d = x.shape
    div_term = jnp.exp(
        jnp.arange(0, d, 2, dtype=jnp.float32) * -(math.log(theta) / d)
    )
    pos = start_pos + jnp.arange(s, dtype=jnp.float32)
    freqs = pos[:, None] * div_term[None, :]                     # (s, d/2)
    w = jnp.exp(1j * freqs.astype(jnp.complex64))                # (s, d/2)
    xc = x.astype(jnp.float32).reshape(b, s, n, d // 2, 2)
    xc = xc[..., 0] + 1j * xc[..., 1]                            # (b, s, n, d/2)
    yc = xc * w[None, :, None, :]
    y = jnp.stack([jnp.real(yc), jnp.imag(yc)], axis=-1).reshape(b, s, n, d)
    return y.astype(x.dtype)


if __name__ == "__main__":
    key = jax.random.PRNGKey(0)
    b, s, n, d = 2, 8, 4, 32
    x = jax.random.normal(key, (b, s, n, d), dtype=jnp.float32)

    y = jax.block_until_ready(rotary_embedding(x, start_pos=0))
    y_ref = _rotary_embedding_ref(x, start_pos=0)
    assert y.shape == x.shape and y.dtype == x.dtype
    assert jnp.allclose(y, y_ref, atol=1e-5, rtol=1e-5)

    # start_pos offset path
    y2 = jax.block_until_ready(rotary_embedding(x, start_pos=2))
    y2_ref = _rotary_embedding_ref(x, start_pos=2)
    assert jnp.allclose(y2, y2_ref, atol=1e-5, rtol=1e-5)

    # batch == 1, multi-tile path (>= 2 parallel grid steps for v7x dual-TC)
    x3 = jax.random.normal(jax.random.PRNGKey(1), (1, 16, 2, 64), dtype=jnp.float32)
    y3 = jax.block_until_ready(rotary_embedding(x3, start_pos=0))
    y3_ref = _rotary_embedding_ref(x3, start_pos=0)
    assert jnp.allclose(y3, y3_ref, atol=1e-5, rtol=1e-5)

    print("KERNEL_OK")
</pallas_src>

<mosaic_0001>
module attributes {stable_mosaic.version = 11 : i64} {
  func.func @_rope_kernel(%arg0: i32, %arg1: i32, %arg2: memref<1x8x1x128xf32, #tpu.memory_space<vmem>>, %arg3: memref<3x8x1x128xf32, #tpu.memory_space<vmem>>, %arg4: memref<1x8x1x128xf32, #tpu.memory_space<vmem>>) attributes {dimension_semantics = [#tpu.dimension_semantics<parallel>, #tpu.dimension_semantics<parallel>], iteration_bounds = array<i64: 1, 2>, scalar_prefetch = 0 : i64, scratch_operands = 0 : i64, tpu.core_type = #tpu.core_type<tc>, window_params = [{transform_indices = @transform_0, window_bounds = array<i64: 1, 8, 1, 128>}, {transform_indices = @transform_1, window_bounds = array<i64: 3, 8, 1, 128>}, {transform_indices = @transform_2, window_bounds = array<i64: 1, 8, 1, 128>}]} {
    %c0 = arith.constant 0 : index
    %c0_0 = arith.constant 0 : index
    %c0_1 = arith.constant 0 : index
    %c0_2 = arith.constant 0 : index
    %0 = vector.load %arg2[%c0, %c0_0, %c0_1, %c0_2] : memref<1x8x1x128xf32, #tpu.memory_space<vmem>>, vector<1x8x1x128xf32>
    %c0_3 = arith.constant 0 : index
    %c0_4 = arith.constant 0 : index
    %c0_5 = arith.constant 0 : index
    %c0_6 = arith.constant 0 : index
    %1 = vector.load %arg3[%c0_3, %c0_4, %c0_5, %c0_6] : memref<3x8x1x128xf32, #tpu.memory_space<vmem>>, vector<1x8x1x128xf32>
    %2 = vector.shape_cast %1 : vector<1x8x1x128xf32> to vector<8x1x128xf32>
    %3 = vector.shape_cast %2 : vector<8x1x128xf32> to vector<1x8x1x128xf32>
    %c1 = arith.constant 1 : index
    %c0_7 = arith.constant 0 : index
    %c0_8 = arith.constant 0 : index
    %c0_9 = arith.constant 0 : index
    %4 = vector.load %arg3[%c1, %c0_7, %c0_8, %c0_9] : memref<3x8x1x128xf32, #tpu.memory_space<vmem>>, vector<1x8x1x128xf32>
    %5 = vector.shape_cast %4 : vector<1x8x1x128xf32> to vector<8x1x128xf32>
    %6 = vector.shape_cast %5 : vector<8x1x128xf32> to vector<1x8x1x128xf32>
    %c2 = arith.constant 2 : index
    %c0_10 = arith.constant 0 : index
    %c0_11 = arith.constant 0 : index
    %c0_12 = arith.constant 0 : index
    %7 = vector.load %arg3[%c2, %c0_10, %c0_11, %c0_12] : memref<3x8x1x128xf32, #tpu.memory_space<vmem>>, vector<1x8x1x128xf32>
    %8 = vector.shape_cast %7 : vector<1x8x1x128xf32> to vector<8x1x128xf32>
    %9 = vector.shape_cast %8 : vector<8x1x128xf32> to vector<1x8x1x128xf32>
    %c127_i32 = arith.constant 127 : i32
    %10 = tpu.dynamic_rotate %0 by %c127_i32 dim 3 : vector<1x8x1x128xf32>, i32 -> vector<1x8x1x128xf32>
    %c1_i32 = arith.constant 1 : i32
    %11 = tpu.dynamic_rotate %0 by %c1_i32 dim 3 : vector<1x8x1x128xf32>, i32 -> vector<1x8x1x128xf32>
    %12 = arith.mulf %0, %3 : vector<1x8x1x128xf32>
    %13 = arith.mulf %10, %6 : vector<1x8x1x128xf32>
    %14 = arith.addf %12, %13 : vector<1x8x1x128xf32>
    %15 = arith.mulf %11, %9 : vector<1x8x1x128xf32>
    %16 = arith.addf %14, %15 : vector<1x8x1x128xf32>
    %c0_13 = arith.constant 0 : index
    %c0_14 = arith.constant 0 : index
    %c0_15 = arith.constant 0 : index
    %c0_16 = arith.constant 0 : index
    %17 = vector.load %arg4[%c0_13, %c0_14, %c0_15, %c0_16] : memref<1x8x1x128xf32, #tpu.memory_space<vmem>>, vector<1x8x1x128xf32>
    tpu.vector_store %arg4[%c0_13, %c0_14, %c0_15, %c0_16], %16 {strides = array<i32>} : memref<1x8x1x128xf32, #tpu.memory_space<vmem>>, vector<1x8x1x128xf32>,
    return
  }
  func.func @transform_0(%arg0: i32, %arg1: i32) -> (i32, i32, i32, i32) {
    %c0_i32 = arith.constant 0 : i32
    %c0_i32_0 = arith.constant 0 : i32
    %c0_i32_1 = arith.constant 0 : i32
    return %arg1, %arg0, %c0_i32, %c0_i32_0 : i32, i32, i32, i32
  }
  func.func @transform_1(%arg0: i32, %arg1: i32) -> (i32, i32, i32, i32) {
    %c0_i32 = arith.constant 0 : i32
    %c0_i32_0 = arith.constant 0 : i32
    %c0_i32_1 = arith.constant 0 : i32
    %c0_i32_2 = arith.constant 0 : i32
    return %c0_i32, %arg0, %c0_i32_0, %c0_i32_1 : i32, i32, i32, i32
  }
  func.func @transform_2(%arg0: i32, %arg1: i32) -> (i32, i32, i32, i32) {
    %c0_i32 = arith.constant 0 : i32
    %c0_i32_0 = arith.constant 0 : i32
    %c0_i32_1 = arith.constant 0 : i32
    return %arg1, %arg0, %c0_i32, %c0_i32_0 : i32, i32, i32, i32
  }
}

</mosaic_0001>

<llo_original>
// kernel: tpu_custom_call.1
$region0: #{tpu_custom_call.1}
  #allocation0 [shape = 'u32[]', space=smem, size = 0x4, offset = 0x4, fixed_abs, tag = 'smem constant byte address 0x4 - core index']
  #allocation1 [shape = 'u32[72,128]{1,0:T(1,128)}', space=vmem, size = 0x9000, scoped, tag = 'internal scratch']
  %s0 = inlined_call_operand.hbm [shape: f32[2,8,1,128], index: 0, kind: input, shape index: {}]
  %s1 = inlined_call_operand.hbm [shape: f32[3,8,1,128], index: 1, kind: input, shape index: {}]
  %s2 = inlined_call_operand.hbm [shape: f32[2,8,1,128], index: 2, kind: output, shape index: {}]
  %s3 = sld [smem:[#allocation0]]
  $region49: #{tpu_custom_call.1} parent=0
    _
  %s5 = ssub.s32 1, %s3
  %s6 = scalar_select 0, %s5, %s3
  $region1: #{tpu_custom_call.1} parent=0
    #allocation2 [shape = 'u8[8192]{0}', space=vmem, size = 0x2000, scoped, tag = 'input window, operand 0']
    #allocation3 [shape = 's32[2]{0}', space=sflag, size = 0x8, scoped, tag = 'scoped memory for tpu_custom_call.1']
    #allocation4 [shape = 's32[2]{0}', space=sflag, size = 0x8, scoped, tag = 'scoped memory for tpu_custom_call.1']
    #allocation5 [shape = 'u8[12288]{0}', space=vmem, size = 0x3000, scoped, tag = 'input window, operand 1, single buffered']
    #allocation6 [shape = 's32[1]{0}', space=sflag, size = 0x4, scoped, tag = 'scoped memory for tpu_custom_call.1']
    #allocation7 [shape = 'u8[8192]{0}', space=vmem, size = 0x2000, scoped, tag = 'output window, operand 0']
    %7 = vsyncpa [#allocation3], 0
    %s8 = scalar_lea.sflag [#allocation3], 1
    %9 = vsyncpa %s8, 0
    %10 = vsyncpa [#allocation6], 0
    %11 = vsyncpa [#allocation4], 0
    %s12 = scalar_lea.sflag [#allocation4], 1
    %13 = vsyncpa %s12, 0
    loop: start=0, step=1, limit=4
    $region2: #{tpu_custom_call.1} parent=1 // loop_pre_header
      _
    $region3: #{tpu_custom_call.1} parent=1 // loop_header
      %s15 = sphi 0, %s19
      %p16 = scmp.ge.s32.totalorder %s15, 4
      %s22 = sphi 0, %s34
      %s23 = sphi 0, %s30
      %s24 = sphi 0, %s22
      %s25 = sphi 0, %s23
      %s26 = sphi 0, %s24
      %s27 = sphi 0, %s25
      %s39 = sphi 0, %s41
      %s42 = sphi 0, %s39
      %s43 = sphi 0, %s42
      %s59 = sphi 0, %s43
      %s65 = sphi 0, %s67
      %s68 = sphi 0, %s65
      %s69 = sphi 0, %s68
      %s85 = sphi 0, %s69
      %s93 = sphi 0, %s95
      %s96 = sphi 0, %s93
      %s97 = sphi 0, %s96
      %s113 = sphi 0, %s97
    $region4: #{tpu_custom_call.1} parent=1 // loop_header_branch
      %18 = sbr.rel (%p16) target = $region8
    $region5: #{tpu_custom_call.1} parent=1 // loop_body
      %s20 = ssub.s32 %s15, 1
      %s21 = ssub.s32 %s15, 2
      %s28 = sadd.s32 1, %s23
      %p29 = scmp.ge.s32.totalorder %s28, 2
      %s30 = scalar_select %p29, 0, %s28
      %s31 = sadd.s32 1, %s22
      %s32 = scalar_select %p29, %s31, %s22
      %p33 = scmp.ge.s32.totalorder %s32, 1
      %s34 = scalar_select %p33, 0, %s32
      %s35 = ssub.s32 %s23, %s30
      %s36 = ssub.s32 %s22, %s34
      %s37 = sor.u32 %s35, %s36
      %p38 = scmp.eq.s32.totalorder %s37, 0
      %s40 = sadd.s32 %s39, 1
      %s41 = scalar_select %p38, %s39, %s40
      %p44 = pneg %p38
      %p45 = scmp.eq.s32.totalorder %s15, 1
      %p46 = por %p44, %p45
      %p47 = scmp.ne.s32.totalorder %s39, %s42
      %p48 = scmp.eq.s32.totalorder %s15, 0
      %p49 = por %p47, %p48
      %p50 = scmp.ne.s32.totalorder %s39, %s42
      %p51 = scmp.eq.s32.totalorder %s20, 1
      %p52 = por %p50, %p51
      %p53 = scmp.ne.s32.totalorder %s42, %s43
      %p54 = scmp.eq.s32.totalorder %s20, 0
      %p55 = por %p53, %p54
      %p56 = scmp.ne.s32.totalorder %s42, %s43
      %p57 = scmp.eq.s32.totalorder %s21, 1
      %p58 = por %p56, %p57
      %p60 = scmp.ne.s32.totalorder %s43, %s59
      %p61 = scmp.eq.s32.totalorder %s21, 0
      %p62 = por %p60, %p61
      %s63 = ssub.s32 %s22, %s34
      %p64 = scmp.eq.s32.totalorder %s63, 0
      %s66 = sadd.s32 %s65, 1
      %s67 = scalar_select %p64, %s65, %s66
      %p70 = pneg %p64
      %p71 = scmp.eq.s32.totalorder %s15, 1
      %p72 = por %p70, %p71
      %p73 = scmp.ne.s32.totalorder %s65, %s68
      %p74 = scmp.eq.s32.totalorder %s15, 0
      %p75 = por %p73, %p74
      %p76 = scmp.ne.s32.totalorder %s65, %s68
      %p77 = scmp.eq.s32.totalorder %s20, 1
      %p78 = por %p76, %p77
      %p79 = scmp.ne.s32.totalorder %s68, %s69
      %p80 = scmp.eq.s32.totalorder %s20, 0
      %p81 = por %p79, %p80
      %p82 = scmp.ne.s32.totalorder %s68, %s69
      %p83 = scmp.eq.s32.totalorder %s21, 1
      %p84 = por %p82, %p83
      %p86 = scmp.ne.s32.totalorder %s69, %s85
      %p87 = scmp.eq.s32.totalorder %s21, 0
      %p88 = por %p86, %p87
      %s89 = ssub.s32 %s23, %s30
      %s90 = ssub.s32 %s22, %s34
      %s91 = sor.u32 %s89, %s90
      %p92 = scmp.eq.s32.totalorder %s91, 0
      %s94 = sadd.s32 %s93, 1
      %s95 = scalar_select %p92, %s93, %s94
      %p98 = pneg %p92
      %p99 = scmp.eq.s32.totalorder %s15, 1
      %p100 = por %p98, %p99
      %p101 = scmp.ne.s32.totalorder %s93, %s96
      %p102 = scmp.eq.s32.totalorder %s15, 0
      %p103 = por %p101, %p102
      %p104 = scmp.ne.s32.totalorder %s93, %s96
      %p105 = scmp.eq.s32.totalorder %s20, 1
      %p106 = por %p104, %p105
      %p107 = scmp.ne.s32.totalorder %s96, %s97
      %p108 = scmp.eq.s32.totalorder %s20, 0
      %p109 = por %p107, %p108
      %p110 = scmp.ne.s32.totalorder %s96, %s97
      %p111 = scmp.eq.s32.totalorder %s21, 1
      %p112 = por %p110, %p111
      %p114 = scmp.ne.s32.totalorder %s97, %s113
      %p115 = scmp.eq.s32.totalorder %s21, 0
      %p116 = por %p114, %p115
      %p117 = scmp.le.s32.totalorder 1, %s15
      %p118 = scmp.lt.s32.totalorder %s15, 3
      %p119 = pnand %p117, %p118
      %p120 = pneg %p119
      // Predicated region
      $region9: #{tpu_custom_call.1} parent=5 // pred_check
        _
      $region10: #{tpu_custom_call.1} parent=5 // pred_check_branch
        %122 = sbr.rel (%p119) target = $region12
      $region11: #{tpu_custom_call.1} parent=5 // pred_region
        %s123 = ssub.s32 %s15, 1
        // Predicated region
        $region13: #{tpu_custom_call.1} parent=11 // pred_check
          %p124 = pneg %p81
        $region14: #{tpu_custom_call.1} parent=11 // pred_check_branch
          %126 = sbr.rel (%p124) target = $region16
        $region15: #{tpu_custom_call.1} parent=11 // pred_region
          %s127 = smul.u32 8, %s24
          %129 = vsyncadd [#allocation6], 0
          %s130 = scalar_lea.hbm %s1, %s127
          %s131 = sshll.u32 %s130, 4
          %s132 = int_to_ptr.hbm [resolvable:$true] %s131
          %s133 = sshll.u32 [#allocation5], 4
          %s134 = int_to_ptr.vmem [resolvable:$true] %s133
          %139 = dma.hbm_to_vmem [thread:$0]  %s132, 384, %s134, [#allocation6], 16, 16, 1
        $region16: #{tpu_custom_call.1} parent=11 // pred_fallthru
          _
      $region12: #{tpu_custom_call.1} parent=5 // pred_fallthru
        _
      %p140 = scmp.lt.s32.totalorder %s15, 2
      // Predicated region
      $region17: #{tpu_custom_call.1} parent=5 // pred_check
        %p141 = pneg %p140
      $region18: #{tpu_custom_call.1} parent=5 // pred_check_branch
        %143 = sbr.rel (%p141) target = $region20
      $region19: #{tpu_custom_call.1} parent=5 // pred_region
        // Predicated region
        $region21: #{tpu_custom_call.1} parent=19 // pred_check
          %p144 = pneg %p49
        $region22: #{tpu_custom_call.1} parent=19 // pred_check_branch
          %146 = sbr.rel (%p144) target = $region24
        $region23: #{tpu_custom_call.1} parent=19 // pred_region
          %s147 = sand.u32 %s39, 1
          %s148 = scalar_lea.sflag [#allocation3], %s147
          %s149 = sand.u32 %s39, 1
          %s150 = smul.addr %s149, 8
          %s151 = scalar_lea.vmem [#allocation2], %s150
          %s152 = smul.u32 8, %s22
          %154 = vsyncadd %s148, 0
          %s155 = smul.addr %s23, 8
          %s156 = sadd.s32 %s152, %s155
          %s157 = scalar_lea.hbm %s0, %s156
          %s158 = sshll.u32 %s157, 4
          %s159 = int_to_ptr.hbm [resolvable:$true] %s158
          %s160 = sshll.u32 %s151, 4
          %s161 = int_to_ptr.vmem [resolvable:$true] %s160
          %166 = dma.hbm_to_vmem [thread:$0]  %s159, 128, %s161, %s148, 16, 16, 1
        $region24: #{tpu_custom_call.1} parent=19 // pred_fallthru
          _
      $region20: #{tpu_custom_call.1} parent=5 // pred_fallthru
        _
      %p167 = scmp.le.s32.totalorder 1, %s15
      %p168 = scmp.lt.s32.totalorder %s15, 3
      %p169 = pnand %p167, %p168
      %p170 = pneg %p169
      // Predicated region
      $region25: #{tpu_custom_call.1} parent=5 // pred_check
        _
      $region26: #{tpu_custom_call.1} parent=5 // pred_check_branch
        %172 = sbr.rel (%p169) target = $region28
      $region27: #{tpu_custom_call.1} parent=5 // pred_region
        %s173 = ssub.s32 %s15, 1
        %s174 = sand.u32 %s42, 1
        %s175 = scalar_lea.sflag [#allocation3], %s174
        %s176 = sand.u32 %s42, 1
        %s177 = smul.addr %s176, 8
        %s178 = scalar_lea.vmem [#allocation2], %s177
        // Predicated region
        $region29: #{tpu_custom_call.1} parent=27 // pred_check
          %p179 = pneg %p55
        $region30: #{tpu_custom_call.1} parent=27 // pred_check_branch
          %181 = sbr.rel (%p179) target = $region32
        $region31: #{tpu_custom_call.1} parent=27 // pred_region
          %183 = dma.done %s175, 128
        $region32: #{tpu_custom_call.1} parent=27 // pred_fallthru
          _
        // Predicated region
        $region33: #{tpu_custom_call.1} parent=27 // pred_check
          %p184 = pneg %p81
        $region34: #{tpu_custom_call.1} parent=27 // pred_check_branch
          %186 = sbr.rel (%p184) target = $region36
        $region35: #{tpu_custom_call.1} parent=27 // pred_region
          %188 = dma.done [#allocation6], 384
        $region36: #{tpu_custom_call.1} parent=27 // pred_fallthru
          _
        %s189 = sand.u32 %s42, 1
        %s190 = scalar_lea.sflag [#allocation3], %s189
        %s191 = sand.u32 %s42, 1
        %s192 = smul.addr %s191, 8
        %s193 = scalar_lea.vmem [#allocation2], %s192
        %p194 = pneg %p55
        %p195 = pneg %p52
        %p196 = pneg %p81
        %p197 = pneg %p78
        %p198 = pneg %p109
        %p199 = pneg %p106
        %s200 = sand.u32 %s96, 1
        %s201 = scalar_lea.sflag [#allocation4], %s200
        %s202 = sand.u32 %s96, 1
        %s203 = smul.addr %s202, 8
        %s204 = scalar_lea.vmem [#allocation7], %s203
        %s205 = smul.u32 8, %s24
        %s206 = smul.u32 8, %s24
        %s207 = smul.u32 8, %s24
        %v208 = vld [vmem:[%s178] sm:$0x1]
        %v209 = vld [vmem:[%s178 + $0x1] sm:$0x1]
        %v210 = vld [vmem:[%s178 + $0x2] sm:$0x1]
        %v211 = vld [vmem:[%s178 + $0x3] sm:$0x1]
        %v212 = vld [vmem:[%s178 + $0x4] sm:$0x1]
        %v213 = vld [vmem:[%s178 + $0x5] sm:$0x1]
        %v214 = vld [vmem:[%s178 + $0x6] sm:$0x1]
        %v215 = vld [vmem:[%s178 + $0x7] sm:$0x1]
        %v216 = vld [vmem:[#allocation5] sm:$0x1]
        %v217 = vld [vmem:[#allocation5 + $0x1] sm:$0x1]
        %v218 = vld [vmem:[#allocation5 + $0x2] sm:$0x1]
        %v219 = vld [vmem:[#allocation5 + $0x3] sm:$0x1]
        %v220 = vld [vmem:[#allocation5 + $0x4] sm:$0x1]
        %v221 = vld [vmem:[#allocation5 + $0x5] sm:$0x1]
        %v222 = vld [vmem:[#allocation5 + $0x6] sm:$0x1]
        %v223 = vld [vmem:[#allocation5 + $0x7] sm:$0x1]
        %s224 = scalar_lea.vmem [#allocation5], 8
        %v225 = vld [vmem:[%s224] sm:$0x1]
        %v226 = vld [vmem:[%s224 + $0x1] sm:$0x1]
        %v227 = vld [vmem:[%s224 + $0x2] sm:$0x1]
        %v228 = vld [vmem:[%s224 + $0x3] sm:$0x1]
        %v229 = vld [vmem:[%s224 + $0x4] sm:$0x1]
        %v230 = vld [vmem:[%s224 + $0x5] sm:$0x1]
        %v231 = vld [vmem:[%s224 + $0x6] sm:$0x1]
        %v232 = vld [vmem:[%s224 + $0x7] sm:$0x1]
        %s233 = scalar_lea.vmem [#allocation5], 16
        %v234 = vld [vmem:[%s233] sm:$0x1]
        %v235 = vld [vmem:[%s233 + $0x1] sm:$0x1]
        %v236 = vld [vmem:[%s233 + $0x2] sm:$0x1]
        %v237 = vld [vmem:[%s233 + $0x3] sm:$0x1]
        %v238 = vld [vmem:[%s233 + $0x4] sm:$0x1]
        %v239 = vld [vmem:[%s233 + $0x5] sm:$0x1]
        %v240 = vld [vmem:[%s233 + $0x6] sm:$0x1]
        %v241 = vld [vmem:[%s233 + $0x7] sm:$0x1]
        %242 = vrot.lane.b32.xlu0 %v208, 127
        %v243 = vpop.permute.xlu0 %242
        %244 = vrot.lane.b32.xlu0 %v209, 127
        %v245 = vpop.permute.xlu0 %244
        %246 = vrot.lane.b32.xlu0 %v210, 127
        %v247 = vpop.permute.xlu0 %246
        %248 = vrot.lane.b32.xlu0 %v211, 127
        %v249 = vpop.permute.xlu0 %248
        %250 = vrot.lane.b32.xlu0 %v212, 127
        %v251 = vpop.permute.xlu0 %250
        %252 = vrot.lane.b32.xlu0 %v213, 127
        %v253 = vpop.permute.xlu0 %252
        %254 = vrot.lane.b32.xlu0 %v214, 127
        %v255 = vpop.permute.xlu0 %254
        %256 = vrot.lane.b32.xlu0 %v215, 127
        %v257 = vpop.permute.xlu0 %256
        %258 = vrot.lane.b32.xlu0 %v208, 1
        %v259 = vpop.permute.xlu0 %258
        %260 = vrot.lane.b32.xlu0 %v209, 1
        %v261 = vpop.permute.xlu0 %260
        %262 = vrot.lane.b32.xlu0 %v210, 1
        %v263 = vpop.permute.xlu0 %262
        %264 = vrot.lane.b32.xlu0 %v211, 1
        %v265 = vpop.permute.xlu0 %264
        %266 = vrot.lane.b32.xlu0 %v212, 1
        %v267 = vpop.permute.xlu0 %266
        %268 = vrot.lane.b32.xlu0 %v213, 1
        %v269 = vpop.permute.xlu0 %268
        %270 = vrot.lane.b32.xlu0 %v214, 1
        %v271 = vpop.permute.xlu0 %270
        %272 = vrot.lane.b32.xlu0 %v215, 1
        %v273 = vpop.permute.xlu0 %272
        %v274 = vmul.f32 %v208, %v216
        %v275 = vmul.f32 %v209, %v217
        %v276 = vmul.f32 %v210, %v218
        %v277 = vmul.f32 %v211, %v219
        %v278 = vmul.f32 %v212, %v220
        %v279 = vmul.f32 %v213, %v221
        %v280 = vmul.f32 %v214, %v222
        %v281 = vmul.f32 %v215, %v223
        %v282 = vmul.f32 %v243, %v225
        %v283 = vmul.f32 %v245, %v226
        %v284 = vmul.f32 %v247, %v227
        %v285 = vmul.f32 %v249, %v228
        %v286 = vmul.f32 %v251, %v229
        %v287 = vmul.f32 %v253, %v230
        %v288 = vmul.f32 %v255, %v231
        %v289 = vmul.f32 %v257, %v232
        %v290 = vadd.f32 %v274, %v282
        %v291 = vadd.f32 %v275, %v283
        %v292 = vadd.f32 %v276, %v284
        %v293 = vadd.f32 %v277, %v285
        %v294 = vadd.f32 %v278, %v286
        %v295 = vadd.f32 %v279, %v287
        %v296 = vadd.f32 %v280, %v288
        %v297 = vadd.f32 %v281, %v289
        %v298 = vmul.f32 %v259, %v234
        %v299 = vmul.f32 %v261, %v235
        %v300 = vmul.f32 %v263, %v236
        %v301 = vmul.f32 %v265, %v237
        %v302 = vmul.f32 %v267, %v238
        %v303 = vmul.f32 %v269, %v239
        %v304 = vmul.f32 %v271, %v240
        %v305 = vmul.f32 %v273, %v241
        %v306 = vadd.f32 %v290, %v298
        %v307 = vadd.f32 %v291, %v299
        %v308 = vadd.f32 %v292, %v300
        %v309 = vadd.f32 %v293, %v301
        %v310 = vadd.f32 %v294, %v302
        %v311 = vadd.f32 %v295, %v303
        %v312 = vadd.f32 %v296, %v304
        %v313 = vadd.f32 %v297, %v305
        %314 = vst [vmem:[%s204] sm:$0x1] %v306
        %315 = vst [vmem:[%s204 + $0x1] sm:$0x1] %v307
        %316 = vst [vmem:[%s204 + $0x2] sm:$0x1] %v308
        %317 = vst [vmem:[%s204 + $0x3] sm:$0x1] %v309
        %318 = vst [vmem:[%s204 + $0x4] sm:$0x1] %v310
        %319 = vst [vmem:[%s204 + $0x5] sm:$0x1] %v311
        %320 = vst [vmem:[%s204 + $0x6] sm:$0x1] %v312
        %321 = vst [vmem:[%s204 + $0x7] sm:$0x1] %v313
        %s322 = sand.u32 %s96, 1
        %s323 = scalar_lea.sflag [#allocation4], %s322
        %s324 = sand.u32 %s96, 1
        %s325 = smul.addr %s324, 8
        %s326 = scalar_lea.vmem [#allocation7], %s325
        // Predicated region
        $region37: #{tpu_custom_call.1} parent=27 // pred_check
          %p327 = pneg %p106
        $region38: #{tpu_custom_call.1} parent=27 // pred_check_branch
          %329 = sbr.rel (%p327) target = $region40
        $region39: #{tpu_custom_call.1} parent=27 // pred_region
          %s330 = smul.u32 8, %s24
          %332 = vsyncadd %s323, 0
          %s333 = smul.addr %s25, 8
          %s334 = sadd.s32 %s330, %s333
          %s335 = scalar_lea.hbm %s2, %s334
          %s336 = sshll.u32 %s326, 4
          %s337 = int_to_ptr.vmem [resolvable:$true] %s336
          %s338 = sshll.u32 %s335, 4
          %s339 = int_to_ptr.hbm [resolvable:$true] %s338
          %344 = dma.vmem_to_hbm [thread:$0]  %s337, 128, %s339, %s323, 16, 16, 1
        $region40: #{tpu_custom_call.1} parent=27 // pred_fallthru
          _
      $region28: #{tpu_custom_call.1} parent=5 // pred_fallthru
        _
      %p345 = scmp.le.s32.totalorder 2, %s15
      // Predicated region
      $region41: #{tpu_custom_call.1} parent=5 // pred_check
        %p346 = pneg %p345
      $region42: #{tpu_custom_call.1} parent=5 // pred_check_branch
        %348 = sbr.rel (%p346) target = $region44
      $region43: #{tpu_custom_call.1} parent=5 // pred_region
        %s349 = ssub.s32 %s15, 2
        // Predicated region
        $region45: #{tpu_custom_call.1} parent=43 // pred_check
          %p350 = pneg %p112
        $region46: #{tpu_custom_call.1} parent=43 // pred_check_branch
          %352 = sbr.rel (%p350) target = $region48
        $region47: #{tpu_custom_call.1} parent=43 // pred_region
          %s353 = sand.u32 %s97, 1
          %s354 = scalar_lea.sflag [#allocation4], %s353
          %s355 = sand.u32 %s97, 1
          %s356 = smul.addr %s355, 8
          %s357 = scalar_lea.vmem [#allocation7], %s356
          %359 = dma.done %s354, 128
        $region48: #{tpu_custom_call.1} parent=43 // pred_fallthru
          _
      $region44: #{tpu_custom_call.1} parent=5 // pred_fallthru
        _
    $region6: #{tpu_custom_call.1} parent=1 // loop_footer
      %s19 = sadd.s32 1, %s15
    $region7: #{tpu_custom_call.1} parent=1 // loop_footer_branch
      %14 = sbr.rel target = $region3
    $region8: #{tpu_custom_call.1} parent=1 // loop_exit
      _
    %360 = vsyncpa [#allocation3], 1
    %s361 = scalar_lea.sflag [#allocation3], 1
    %362 = vsyncpa %s361, 1
    %363 = vsyncpa [#allocation6], 1
    %364 = vsyncpa [#allocation4], 1
    %s365 = scalar_lea.sflag [#allocation4], 1
    %366 = vsyncpa %s365, 1

</llo_original>
